<compile_context>
chip_gen: v6e
topology: v6e:2x2x1
jax: 0.10.0
libtpu: 0.0.40
codegen_flags: <defaults>
</compile_context>

<pallas_src>
import functools

import jax
import jax.numpy as jnp
from jax.experimental import pallas as pl
from jax.experimental.pallas import tpu as pltpu

INPUT_SIZE = 60   # fixed by the module (nn.LSTM(input_size=60, ...))
HIDDEN = 32       # hidden_size (small for the example)


def lstm_ln_kernel(x_ref, wih_ref, whh_ref, b_ref, gamma_ref, beta_ref,
                   o_ref, gx_ref, *, batch, seq_len):
    """x_ref: (T*B, I) time-major rows.  wih_ref: (I, 4H)  whh_ref: (H, 4H)
       b_ref: (1, 4H)  gamma_ref/beta_ref: (1, H)  o_ref: (B, H)
       gx_ref: VMEM scratch (T*B, 4H) holding the hoisted input projection."""
    B, T = batch, seq_len
    H = whh_ref.shape[0]

    # ---- Hoisted input projection: one big MXU matmul + one bias broadcast,
    #      completely off the recurrent critical path. ----
    gx_ref[...] = (
        jnp.dot(x_ref[...], wih_ref[...], preferred_element_type=jnp.float32)
        + b_ref[...]
    )

    whh = whh_ref[...]

    def step(t, carry):
        h, c = carry
        row = pl.multiple_of(t * B, B)
        gx_t = gx_ref[pl.ds(row, B), :]                          # (B, 4H)
        gates = gx_t + jnp.dot(h, whh, preferred_element_type=jnp.float32)
        # One full-vreg sigmoid + one full-vreg tanh (EUP), then static slices.
        sig = jax.nn.sigmoid(gates)
        th = jnp.tanh(gates)
        # PyTorch gate order: i, f, g, o
        i_g = sig[:, 0 * H:1 * H]
        f_g = sig[:, 1 * H:2 * H]
        g_g = th[:, 2 * H:3 * H]
        o_g = sig[:, 3 * H:4 * H]
        c_new = f_g * c + i_g * g_g
        h_new = o_g * jnp.tanh(c_new)
        return (h_new, c_new)

    h0 = jnp.zeros((B, H), jnp.float32)
    c0 = jnp.zeros((B, H), jnp.float32)
    # Fully unrolled recurrence: latency-bound serial chain, give LLO visibility.
    h_last, _ = jax.lax.fori_loop(0, T, step, (h0, c0), unroll=True)

    # LayerNorm over the hidden dimension (eps = 1e-5, nn.LayerNorm default).
    mean = jnp.mean(h_last, axis=-1, keepdims=True)
    var = jnp.mean((h_last - mean) ** 2, axis=-1, keepdims=True)
    y = (h_last - mean) * jax.lax.rsqrt(var + 1e-5)
    o_ref[...] = (y * gamma_ref[...] + beta_ref[...]).astype(o_ref.dtype)


def bruce_lstm_cell(x, params):
    """x: (B, T, I) float32 (batch_first, like the PyTorch module). Returns (B, H)."""
    B, T, I = x.shape
    H = params["w_hh_t"].shape[0]

    # Time-major flatten: (B,T,I) -> (T,B,I) -> (T*B, I) so the kernel reads a
    # contiguous B-row slab per timestep with a dynamic leading-axis pl.ds slice.
    x_tm = jnp.transpose(x, (1, 0, 2)).reshape(T * B, I)

    vmem = pl.BlockSpec(memory_space=pltpu.MemorySpace.VMEM)

    flops = 2 * T * B * I * 4 * H + 2 * T * B * H * 4 * H
    transcendentals = T * (2 * B * 4 * H + B * H)
    bytes_accessed = 4 * (T * B * I + I * 4 * H + H * 4 * H + 4 * H + 2 * H + B * H)

    kernel = functools.partial(lstm_ln_kernel, batch=B, seq_len=T)
    return pl.pallas_call(
        kernel,
        out_shape=jax.ShapeDtypeStruct((B, H), x.dtype),
        in_specs=[vmem] * 6,
        out_specs=vmem,
        scratch_shapes=[pltpu.VMEM((T * B, 4 * H), jnp.float32)],
        cost_estimate=pl.CostEstimate(
            flops=flops,
            transcendentals=transcendentals,
            bytes_accessed=bytes_accessed,
        ),
    )(
        x_tm,
        params["w_ih_t"],
        params["w_hh_t"],
        params["b"],
        params["gamma"],
        params["beta"],
    )


def init_params(key, hidden=HIDDEN, input_size=INPUT_SIZE):
    """Deterministic synthetic init mirroring nn.LSTM / nn.LayerNorm parameter shapes."""
    k1, k2, k3, k4 = jax.random.split(key, 4)
    bound = 1.0 / jnp.sqrt(jnp.float32(hidden))
    w_ih = jax.random.uniform(k1, (4 * hidden, input_size), jnp.float32, -bound, bound)
    w_hh = jax.random.uniform(k2, (4 * hidden, hidden), jnp.float32, -bound, bound)
    b_ih = jax.random.uniform(k3, (4 * hidden,), jnp.float32, -bound, bound)
    b_hh = jax.random.uniform(k4, (4 * hidden,), jnp.float32, -bound, bound)
    return {
        "w_ih_t": w_ih.T,                              # (I, 4H)
        "w_hh_t": w_hh.T,                              # (H, 4H)
        "b": (b_ih + b_hh).reshape(1, 4 * hidden),     # (1, 4H)
        "gamma": jnp.ones((1, hidden), jnp.float32),   # LayerNorm weight default
        "beta": jnp.zeros((1, hidden), jnp.float32),   # LayerNorm bias default
    }


def reference_forward(x, params):
    """Pure-JAX reference (same math) for a correctness check."""
    B, T, I = x.shape
    H = params["w_hh_t"].shape[0]
    wih, whh, b = params["w_ih_t"], params["w_hh_t"], params["b"]

    def step(carry, x_t):
        h, c = carry
        gates = x_t @ wih + h @ whh + b
        i_g = jax.nn.sigmoid(gates[:, 0 * H:1 * H])
        f_g = jax.nn.sigmoid(gates[:, 1 * H:2 * H])
        g_g = jnp.tanh(gates[:, 2 * H:3 * H])
        o_g = jax.nn.sigmoid(gates[:, 3 * H:4 * H])
        c = f_g * c + i_g * g_g
        h = o_g * jnp.tanh(c)
        return (h, c), None

    h0 = jnp.zeros((B, H), jnp.float32)
    c0 = jnp.zeros((B, H), jnp.float32)
    (h, _), _ = jax.lax.scan(step, (h0, c0), jnp.transpose(x, (1, 0, 2)))
    mean = jnp.mean(h, axis=-1, keepdims=True)
    var = jnp.mean((h - mean) ** 2, axis=-1, keepdims=True)
    y = (h - mean) * jax.lax.rsqrt(var + 1e-5)
    return y * params["gamma"] + params["beta"]


if __name__ == "__main__":
    key = jax.random.PRNGKey(0)
    kx, kp = jax.random.split(key)

    B, T = 2, 8
    x = jax.random.normal(kx, (B, T, INPUT_SIZE), jnp.float32)
    params = init_params(kp)

    out = bruce_lstm_cell(x, params)
    out = jax.block_until_ready(out)

    ref = reference_forward(x, params)
    assert out.shape == (B, HIDDEN)
    assert jnp.allclose(out, ref, atol=1e-5, rtol=1e-5), "kernel/reference mismatch"

    print("KERNEL_OK")
</pallas_src>

<mosaic_0001>
module attributes {stable_mosaic.version = 11 : i64} {
  func.func @lstm_ln_kernel(%arg0: memref<16x60xf32, #tpu.memory_space<vmem>>, %arg1: memref<60x128xf32, #tpu.memory_space<vmem>>, %arg2: memref<32x128xf32, #tpu.memory_space<vmem>>, %arg3: memref<1x128xf32, #tpu.memory_space<vmem>>, %arg4: memref<1x32xf32, #tpu.memory_space<vmem>>, %arg5: memref<1x32xf32, #tpu.memory_space<vmem>>, %arg6: memref<2x32xf32, #tpu.memory_space<vmem>>, %arg7: memref<16x128xf32, #tpu.memory_space<vmem>>) attributes {dimension_semantics = [], scalar_prefetch = 0 : i64, scratch_operands = 1 : i64, tpu.core_type = #tpu.core_type<tc>} {
    %c0 = arith.constant 0 : index
    %c0_0 = arith.constant 0 : index
    %0 = vector.load %arg0[%c0, %c0_0] : memref<16x60xf32, #tpu.memory_space<vmem>>, vector<16x60xf32>
    %c0_1 = arith.constant 0 : index
    %c0_2 = arith.constant 0 : index
    %1 = vector.load %arg1[%c0_1, %c0_2] : memref<60x128xf32, #tpu.memory_space<vmem>>, vector<60x128xf32>
    %cst = arith.constant dense<0.000000e+00> : vector<16x128xf32>
    %2 = tpu.matmul %0, %1, %cst {dimension_numbers = #tpu.dot_dimension_numbers<[1], [0], [0], [1], [0, 0, 1, 1], [], []>} : vector<16x60xf32>, vector<60x128xf32>, vector<16x128xf32> -> vector<16x128xf32>
    %c0_3 = arith.constant 0 : index
    %c0_4 = arith.constant 0 : index
    %3 = vector.load %arg3[%c0_3, %c0_4] : memref<1x128xf32, #tpu.memory_space<vmem>>, vector<1x128xf32>
    %4 = vector.broadcast %3 : vector<1x128xf32> to vector<16x128xf32>
    %5 = arith.addf %2, %4 : vector<16x128xf32>
    %c0_5 = arith.constant 0 : index
    %c0_6 = arith.constant 0 : index
    %6 = vector.load %arg7[%c0_5, %c0_6] : memref<16x128xf32, #tpu.memory_space<vmem>>, vector<16x128xf32>
    tpu.vector_store %arg7[%c0_5, %c0_6], %5 {strides = array<i32>} : memref<16x128xf32, #tpu.memory_space<vmem>>, vector<16x128xf32>,
    %c0_7 = arith.constant 0 : index
    %c0_8 = arith.constant 0 : index
    %7 = vector.load %arg2[%c0_7, %c0_8] : memref<32x128xf32, #tpu.memory_space<vmem>>, vector<32x128xf32>
    %cst_9 = arith.constant 0.000000e+00 : f32
    %8 = vector.broadcast %cst_9 : f32 to vector<2x32xf32>
    %cst_10 = arith.constant 0.000000e+00 : f32
    %9 = vector.broadcast %cst_10 : f32 to vector<2x32xf32>
    %c0_i32 = arith.constant 0 : i32
    %c2_i32 = arith.constant 2 : i32
    %10 = arith.muli %c0_i32, %c2_i32 : i32
    %11 = tpu.assume_multiple %10, 2 : i32
    %12 = arith.index_cast %11 : i32 to index
    %c0_11 = arith.constant 0 : index
    %13 = vector.load %arg7[%12, %c0_11] : memref<16x128xf32, #tpu.memory_space<vmem>>, vector<2x128xf32>
    %cst_12 = arith.constant dense<0.000000e+00> : vector<2x128xf32>
    %14 = tpu.matmul %8, %7, %cst_12 {dimension_numbers = #tpu.dot_dimension_numbers<[1], [0], [0], [1], [0, 0, 1, 1], [], []>} : vector<2x32xf32>, vector<32x128xf32>, vector<2x128xf32> -> vector<2x128xf32>
    %15 = arith.addf %13, %14 : vector<2x128xf32>
    %16 = arith.negf %15 : vector<2x128xf32>
    %17 = math.exp %16 : vector<2x128xf32>
    %cst_13 = arith.constant 1.000000e+00 : f32
    %18 = vector.broadcast %cst_13 : f32 to vector<2x128xf32>
    %19 = arith.addf %18, %17 : vector<2x128xf32>
    %20 = arith.divf %18, %19 : vector<2x128xf32>
    %21 = math.tanh %15 : vector<2x128xf32>
    %22 = vector.extract_strided_slice %20 {offsets = [0, 0], sizes = [2, 32], strides = [1, 1]} : vector<2x128xf32> to vector<2x32xf32>
    %23 = vector.extract_strided_slice %20 {offsets = [0, 32], sizes = [2, 32], strides = [1, 1]} : vector<2x128xf32> to vector<2x32xf32>
    %24 = vector.extract_strided_slice %21 {offsets = [0, 64], sizes = [2, 32], strides = [1, 1]} : vector<2x128xf32> to vector<2x32xf32>
    %25 = vector.extract_strided_slice %20 {offsets = [0, 96], sizes = [2, 32], strides = [1, 1]} : vector<2x128xf32> to vector<2x32xf32>
    %26 = arith.mulf %23, %9 : vector<2x32xf32>
    %27 = arith.mulf %22, %24 : vector<2x32xf32>
    %28 = arith.addf %26, %27 : vector<2x32xf32>
    %29 = math.tanh %28 : vector<2x32xf32>
    %30 = arith.mulf %25, %29 : vector<2x32xf32>
    %c1_i32 = arith.constant 1 : i32
    %c2_i32_14 = arith.constant 2 : i32
    %31 = arith.muli %c1_i32, %c2_i32_14 : i32
    %32 = tpu.assume_multiple %31, 2 : i32
    %33 = arith.index_cast %32 : i32 to index
    %c0_15 = arith.constant 0 : index
    %34 = vector.load %arg7[%33, %c0_15] : memref<16x128xf32, #tpu.memory_space<vmem>>, vector<2x128xf32>
    %cst_16 = arith.constant dense<0.000000e+00> : vector<2x128xf32>
    %35 = tpu.matmul %30, %7, %cst_16 {dimension_numbers = #tpu.dot_dimension_numbers<[1], [0], [0], [1], [0, 0, 1, 1], [], []>} : vector<2x32xf32>, vector<32x128xf32>, vector<2x128xf32> -> vector<2x128xf32>
    %36 = arith.addf %34, %35 : vector<2x128xf32>
    %37 = arith.negf %36 : vector<2x128xf32>
    %38 = math.exp %37 : vector<2x128xf32>
    %cst_17 = arith.constant 1.000000e+00 : f32
    %39 = vector.broadcast %cst_17 : f32 to vector<2x128xf32>
    %40 = arith.addf %39, %38 : vector<2x128xf32>
    %41 = arith.divf %39, %40 : vector<2x128xf32>
    %42 = math.tanh %36 : vector<2x128xf32>
    %43 = vector.extract_strided_slice %41 {offsets = [0, 0], sizes = [2, 32], strides = [1, 1]} : vector<2x128xf32> to vector<2x32xf32>
    %44 = vector.extract_strided_slice %41 {offsets = [0, 32], sizes = [2, 32], strides = [1, 1]} : vector<2x128xf32> to vector<2x32xf32>
    %45 = vector.extract_strided_slice %42 {offsets = [0, 64], sizes = [2, 32], strides = [1, 1]} : vector<2x128xf32> to vector<2x32xf32>
    %46 = vector.extract_strided_slice %41 {offsets = [0, 96], sizes = [2, 32], strides = [1, 1]} : vector<2x128xf32> to vector<2x32xf32>
    %47 = arith.mulf %44, %28 : vector<2x32xf32>
    %48 = arith.mulf %43, %45 : vector<2x32xf32>
    %49 = arith.addf %47, %48 : vector<2x32xf32>
    %50 = math.tanh %49 : vector<2x32xf32>
    %51 = arith.mulf %46, %50 : vector<2x32xf32>
    %c2_i32_18 = arith.constant 2 : i32
    %c2_i32_19 = arith.constant 2 : i32
    %52 = arith.muli %c2_i32_18, %c2_i32_19 : i32
    %53 = tpu.assume_multiple %52, 2 : i32
    %54 = arith.index_cast %53 : i32 to index
    %c0_20 = arith.constant 0 : index
    %55 = vector.load %arg7[%54, %c0_20] : memref<16x128xf32, #tpu.memory_space<vmem>>, vector<2x128xf32>
    %cst_21 = arith.constant dense<0.000000e+00> : vector<2x128xf32>
    %56 = tpu.matmul %51, %7, %cst_21 {dimension_numbers = #tpu.dot_dimension_numbers<[1], [0], [0], [1], [0, 0, 1, 1], [], []>} : vector<2x32xf32>, vector<32x128xf32>, vector<2x128xf32> -> vector<2x128xf32>
    %57 = arith.addf %55, %56 : vector<2x128xf32>
    %58 = arith.negf %57 : vector<2x128xf32>
    %59 = math.exp %58 : vector<2x128xf32>
    %cst_22 = arith.constant 1.000000e+00 : f32
    %60 = vector.broadcast %cst_22 : f32 to vector<2x128xf32>
    %61 = arith.addf %60, %59 : vector<2x128xf32>
    %62 = arith.divf %60, %61 : vector<2x128xf32>
    %63 = math.tanh %57 : vector<2x128xf32>
    %64 = vector.extract_strided_slice %62 {offsets = [0, 0], sizes = [2, 32], strides = [1, 1]} : vector<2x128xf32> to vector<2x32xf32>
    %65 = vector.extract_strided_slice %62 {offsets = [0, 32], sizes = [2, 32], strides = [1, 1]} : vector<2x128xf32> to vector<2x32xf32>
    %66 = vector.extract_strided_slice %63 {offsets = [0, 64], sizes = [2, 32], strides = [1, 1]} : vector<2x128xf32> to vector<2x32xf32>
    %67 = vector.extract_strided_slice %62 {offsets = [0, 96], sizes = [2, 32], strides = [1, 1]} : vector<2x128xf32> to vector<2x32xf32>
    %68 = arith.mulf %65, %49 : vector<2x32xf32>
    %69 = arith.mulf %64, %66 : vector<2x32xf32>
    %70 = arith.addf %68, %69 : vector<2x32xf32>
    %71 = math.tanh %70 : vector<2x32xf32>
    %72 = arith.mulf %67, %71 : vector<2x32xf32>
    %c3_i32 = arith.constant 3 : i32
    %c2_i32_23 = arith.constant 2 : i32
    %73 = arith.muli %c3_i32, %c2_i32_23 : i32
    %74 = tpu.assume_multiple %73, 2 : i32
    %75 = arith.index_cast %74 : i32 to index
    %c0_24 = arith.constant 0 : index
    %76 = vector.load %arg7[%75, %c0_24] : memref<16x128xf32, #tpu.memory_space<vmem>>, vector<2x128xf32>
    %cst_25 = arith.constant dense<0.000000e+00> : vector<2x128xf32>
    %77 = tpu.matmul %72, %7, %cst_25 {dimension_numbers = #tpu.dot_dimension_numbers<[1], [0], [0], [1], [0, 0, 1, 1], [], []>} : vector<2x32xf32>, vector<32x128xf32>, vector<2x128xf32> -> vector<2x128xf32>
    %78 = arith.addf %76, %77 : vector<2x128xf32>
    %79 = arith.negf %78 : vector<2x128xf32>
    %80 = math.exp %79 : vector<2x128xf32>
    %cst_26 = arith.constant 1.000000e+00 : f32
    %81 = vector.broadcast %cst_26 : f32 to vector<2x128xf32>
    %82 = arith.addf %81, %80 : vector<2x128xf32>
    %83 = arith.divf %81, %82 : vector<2x128xf32>
    %84 = math.tanh %78 : vector<2x128xf32>
    %85 = vector.extract_strided_slice %83 {offsets = [0, 0], sizes = [2, 32], strides = [1, 1]} : vector<2x128xf32> to vector<2x32xf32>
    %86 = vector.extract_strided_slice %83 {offsets = [0, 32], sizes = [2, 32], strides = [1, 1]} : vector<2x128xf32> to vector<2x32xf32>
    %87 = vector.extract_strided_slice %84 {offsets = [0, 64], sizes = [2, 32], strides = [1, 1]} : vector<2x128xf32> to vector<2x32xf32>
    %88 = vector.extract_strided_slice %83 {offsets = [0, 96], sizes = [2, 32], strides = [1, 1]} : vector<2x128xf32> to vector<2x32xf32>
    %89 = arith.mulf %86, %70 : vector<2x32xf32>
    %90 = arith.mulf %85, %87 : vector<2x32xf32>
    %91 = arith.addf %89, %90 : vector<2x32xf32>
    %92 = math.tanh %91 : vector<2x32xf32>
    %93 = arith.mulf %88, %92 : vector<2x32xf32>
    %c4_i32 = arith.constant 4 : i32
    %c2_i32_27 = arith.constant 2 : i32
    %94 = arith.muli %c4_i32, %c2_i32_27 : i32
    %95 = tpu.assume_multiple %94, 2 : i32
    %96 = arith.index_cast %95 : i32 to index
    %c0_28 = arith.constant 0 : index
    %97 = vector.load %arg7[%96, %c0_28] : memref<16x128xf32, #tpu.memory_space<vmem>>, vector<2x128xf32>
    %cst_29 = arith.constant dense<0.000000e+00> : vector<2x128xf32>
    %98 = tpu.matmul %93, %7, %cst_29 {dimension_numbers = #tpu.dot_dimension_numbers<[1], [0], [0], [1], [0, 0, 1, 1], [], []>} : vector<2x32xf32>, vector<32x128xf32>, vector<2x128xf32> -> vector<2x128xf32>
    %99 = arith.addf %97, %98 : vector<2x128xf32>
    %100 = arith.negf %99 : vector<2x128xf32>
    %101 = math.exp %100 : vector<2x128xf32>
    %cst_30 = arith.constant 1.000000e+00 : f32
    %102 = vector.broadcast %cst_30 : f32 to vector<2x128xf32>
    %103 = arith.addf %102, %101 : vector<2x128xf32>
    %104 = arith.divf %102, %103 : vector<2x128xf32>
    %105 = math.tanh %99 : vector<2x128xf32>
    %106 = vector.extract_strided_slice %104 {offsets = [0, 0], sizes = [2, 32], strides = [1, 1]} : vector<2x128xf32> to vector<2x32xf32>
    %107 = vector.extract_strided_slice %104 {offsets = [0, 32], sizes = [2, 32], strides = [1, 1]} : vector<2x128xf32> to vector<2x32xf32>
    %108 = vector.extract_strided_slice %105 {offsets = [0, 64], sizes = [2, 32], strides = [1, 1]} : vector<2x128xf32> to vector<2x32xf32>
    %109 = vector.extract_strided_slice %104 {offsets = [0, 96], sizes = [2, 32], strides = [1, 1]} : vector<2x128xf32> to vector<2x32xf32>
    %110 = arith.mulf %107, %91 : vector<2x32xf32>
    %111 = arith.mulf %106, %108 : vector<2x32xf32>
    %112 = arith.addf %110, %111 : vector<2x32xf32>
    %113 = math.tanh %112 : vector<2x32xf32>
    %114 = arith.mulf %109, %113 : vector<2x32xf32>
    %c5_i32 = arith.constant 5 : i32
    %c2_i32_31 = arith.constant 2 : i32
    %115 = arith.muli %c5_i32, %c2_i32_31 : i32
    %116 = tpu.assume_multiple %115, 2 : i32
    %117 = arith.index_cast %116 : i32 to index
    %c0_32 = arith.constant 0 : index
    %118 = vector.load %arg7[%117, %c0_32] : memref<16x128xf32, #tpu.memory_space<vmem>>, vector<2x128xf32>
    %cst_33 = arith.constant dense<0.000000e+00> : vector<2x128xf32>
    %119 = tpu.matmul %114, %7, %cst_33 {dimension_numbers = #tpu.dot_dimension_numbers<[1], [0], [0], [1], [0, 0, 1, 1], [], []>} : vector<2x32xf32>, vector<32x128xf32>, vector<2x128xf32> -> vector<2x128xf32>
    %120 = arith.addf %118, %119 : vector<2x128xf32>
    %121 = arith.negf %120 : vector<2x128xf32>
    %122 = math.exp %121 : vector<2x128xf32>
    %cst_34 = arith.constant 1.000000e+00 : f32
    %123 = vector.broadcast %cst_34 : f32 to vector<2x128xf32>
    %124 = arith.addf %123, %122 : vector<2x128xf32>
    %125 = arith.divf %123, %124 : vector<2x128xf32>
    %126 = math.tanh %120 : vector<2x128xf32>
    %127 = vector.extract_strided_slice %125 {offsets = [0, 0], sizes = [2, 32], strides = [1, 1]} : vector<2x128xf32> to vector<2x32xf32>
    %128 = vector.extract_strided_slice %125 {offsets = [0, 32], sizes = [2, 32], strides = [1, 1]} : vector<2x128xf32> to vector<2x32xf32>
    %129 = vector.extract_strided_slice %126 {offsets = [0, 64], sizes = [2, 32], strides = [1, 1]} : vector<2x128xf32> to vector<2x32xf32>
    %130 = vector.extract_strided_slice %125 {offsets = [0, 96], sizes = [2, 32], strides = [1, 1]} : vector<2x128xf32> to vector<2x32xf32>
    %131 = arith.mulf %128, %112 : vector<2x32xf32>
    %132 = arith.mulf %127, %129 : vector<2x32xf32>
    %133 = arith.addf %131, %132 : vector<2x32xf32>
    %134 = math.tanh %133 : vector<2x32xf32>
    %135 = arith.mulf %130, %134 : vector<2x32xf32>
    %c6_i32 = arith.constant 6 : i32
    %c2_i32_35 = arith.constant 2 : i32
    %136 = arith.muli %c6_i32, %c2_i32_35 : i32
    %137 = tpu.assume_multiple %136, 2 : i32
    %138 = arith.index_cast %137 : i32 to index
    %c0_36 = arith.constant 0 : index
    %139 = vector.load %arg7[%138, %c0_36] : memref<16x128xf32, #tpu.memory_space<vmem>>, vector<2x128xf32>
    %cst_37 = arith.constant dense<0.000000e+00> : vector<2x128xf32>
    %140 = tpu.matmul %135, %7, %cst_37 {dimension_numbers = #tpu.dot_dimension_numbers<[1], [0], [0], [1], [0, 0, 1, 1], [], []>} : vector<2x32xf32>, vector<32x128xf32>, vector<2x128xf32> -> vector<2x128xf32>
    %141 = arith.addf %139, %140 : vector<2x128xf32>
    %142 = arith.negf %141 : vector<2x128xf32>
    %143 = math.exp %142 : vector<2x128xf32>
    %cst_38 = arith.constant 1.000000e+00 : f32
    %144 = vector.broadcast %cst_38 : f32 to vector<2x128xf32>
    %145 = arith.addf %144, %143 : vector<2x128xf32>
    %146 = arith.divf %144, %145 : vector<2x128xf32>
    %147 = math.tanh %141 : vector<2x128xf32>
    %148 = vector.extract_strided_slice %146 {offsets = [0, 0], sizes = [2, 32], strides = [1, 1]} : vector<2x128xf32> to vector<2x32xf32>
    %149 = vector.extract_strided_slice %146 {offsets = [0, 32], sizes = [2, 32], strides = [1, 1]} : vector<2x128xf32> to vector<2x32xf32>
    %150 = vector.extract_strided_slice %147 {offsets = [0, 64], sizes = [2, 32], strides = [1, 1]} : vector<2x128xf32> to vector<2x32xf32>
    %151 = vector.extract_strided_slice %146 {offsets = [0, 96], sizes = [2, 32], strides = [1, 1]} : vector<2x128xf32> to vector<2x32xf32>
    %152 = arith.mulf %149, %133 : vector<2x32xf32>
    %153 = arith.mulf %148, %150 : vector<2x32xf32>
    %154 = arith.addf %152, %153 : vector<2x32xf32>
    %155 = math.tanh %154 : vector<2x32xf32>
    %156 = arith.mulf %151, %155 : vector<2x32xf32>
    %c7_i32 = arith.constant 7 : i32
    %c2_i32_39 = arith.constant 2 : i32
    %157 = arith.muli %c7_i32, %c2_i32_39 : i32
    %158 = tpu.assume_multiple %157, 2 : i32
    %159 = arith.index_cast %158 : i32 to index
    %c0_40 = arith.constant 0 : index
    %160 = vector.load %arg7[%159, %c0_40] : memref<16x128xf32, #tpu.memory_space<vmem>>, vector<2x128xf32>
    %cst_41 = arith.constant dense<0.000000e+00> : vector<2x128xf32>
    %161 = tpu.matmul %156, %7, %cst_41 {dimension_numbers = #tpu.dot_dimension_numbers<[1], [0], [0], [1], [0, 0, 1, 1], [], []>} : vector<2x32xf32>, vector<32x128xf32>, vector<2x128xf32> -> vector<2x128xf32>
    %162 = arith.addf %160, %161 : vector<2x128xf32>
    %163 = arith.negf %162 : vector<2x128xf32>
    %164 = math.exp %163 : vector<2x128xf32>
    %cst_42 = arith.constant 1.000000e+00 : f32
    %165 = vector.broadcast %cst_42 : f32 to vector<2x128xf32>
    %166 = arith.addf %165, %164 : vector<2x128xf32>
    %167 = arith.divf %165, %166 : vector<2x128xf32>
    %168 = math.tanh %162 : vector<2x128xf32>
    %169 = vector.extract_strided_slice %167 {offsets = [0, 0], sizes = [2, 32], strides = [1, 1]} : vector<2x128xf32> to vector<2x32xf32>
    %170 = vector.extract_strided_slice %167 {offsets = [0, 32], sizes = [2, 32], strides = [1, 1]} : vector<2x128xf32> to vector<2x32xf32>
    %171 = vector.extract_strided_slice %168 {offsets = [0, 64], sizes = [2, 32], strides = [1, 1]} : vector<2x128xf32> to vector<2x32xf32>
    %172 = vector.extract_strided_slice %167 {offsets = [0, 96], sizes = [2, 32], strides = [1, 1]} : vector<2x128xf32> to vector<2x32xf32>
    %173 = arith.mulf %170, %154 : vector<2x32xf32>
    %174 = arith.mulf %169, %171 : vector<2x32xf32>
    %175 = arith.addf %173, %174 : vector<2x32xf32>
    %176 = math.tanh %175 : vector<2x32xf32>
    %177 = arith.mulf %172, %176 : vector<2x32xf32>
    %c8_i32 = arith.constant 8 : i32
    %cst_43 = arith.constant dense<0.000000e+00> : vector<2xf32>
    %178 = vector.multi_reduction <add>, %177, %cst_43 [1] : vector<2x32xf32> to vector<2xf32>
    %179 = vector.shape_cast %178 : vector<2xf32> to vector<2x1xf32>
    %cst_44 = arith.constant 3.200000e+01 : f32
    %180 = vector.broadcast %cst_44 : f32 to vector<2x1xf32>
    %181 = arith.divf %179, %180 : vector<2x1xf32>
    %182 = vector.broadcast %181 : vector<2x1xf32> to vector<2x32xf32>
    %183 = arith.subf %177, %182 : vector<2x32xf32>
    %184 = arith.mulf %183, %183 : vector<2x32xf32>
    %cst_45 = arith.constant dense<0.000000e+00> : vector<2xf32>
    %185 = vector.multi_reduction <add>, %184, %cst_45 [1] : vector<2x32xf32> to vector<2xf32>
    %186 = vector.shape_cast %185 : vector<2xf32> to vector<2x1xf32>
    %cst_46 = arith.constant 3.200000e+01 : f32
    %187 = vector.broadcast %cst_46 : f32 to vector<2x1xf32>
    %188 = arith.divf %186, %187 : vector<2x1xf32>
    %189 = vector.broadcast %181 : vector<2x1xf32> to vector<2x32xf32>
    %190 = arith.subf %177, %189 : vector<2x32xf32>
    %cst_47 = arith.constant 9.99999974E-6 : f32
    %191 = vector.broadcast %cst_47 : f32 to vector<2x1xf32>
    %192 = arith.addf %188, %191 : vector<2x1xf32>
    %193 = math.rsqrt %192 : vector<2x1xf32>
    %194 = vector.broadcast %193 : vector<2x1xf32> to vector<2x32xf32>
    %195 = arith.mulf %190, %194 : vector<2x32xf32>
    %c0_48 = arith.constant 0 : index
    %c0_49 = arith.constant 0 : index
    %196 = vector.load %arg4[%c0_48, %c0_49] : memref<1x32xf32, #tpu.memory_space<vmem>>, vector<1x32xf32>
    %197 = vector.broadcast %196 : vector<1x32xf32> to vector<2x32xf32>
    %198 = arith.mulf %195, %197 : vector<2x32xf32>
    %c0_50 = arith.constant 0 : index
    %c0_51 = arith.constant 0 : index
    %199 = vector.load %arg5[%c0_50, %c0_51] : memref<1x32xf32, #tpu.memory_space<vmem>>, vector<1x32xf32>
    %200 = vector.broadcast %199 : vector<1x32xf32> to vector<2x32xf32>
    %201 = arith.addf %198, %200 : vector<2x32xf32>
    %c0_52 = arith.constant 0 : index
    %c0_53 = arith.constant 0 : index
    %202 = vector.load %arg6[%c0_52, %c0_53] : memref<2x32xf32, #tpu.memory_space<vmem>>, vector<2x32xf32>
    tpu.vector_store %arg6[%c0_52, %c0_53], %201 {strides = array<i32>} : memref<2x32xf32, #tpu.memory_space<vmem>>, vector<2x32xf32>,
    return
  }
}

</mosaic_0001>

<llo_original>
// kernel: tpu_custom_call.1
$region0: #{tpu_custom_call.1}
  #allocation0 [shape = 'u32[]', space=smem, size = 0x4, offset = 0x4, fixed_abs, tag = 'smem constant byte address 0x4 - core index']
  #allocation1 [shape = 'u32[144,128]{1,0:T(1,128)}', space=vmem, size = 0x12000, scoped, tag = 'internal scratch']
  #allocation2 [shape = 'f32[16,128]{1,0:T(8,128)}', space=vmem, size = 0x2000, scoped, tag = 'scratch operand']
  %s0 = inlined_call_operand.hbm [shape: f32[16,60], index: 0, kind: input, shape index: {}]
  %s1 = inlined_call_operand.hbm [shape: f32[60,128], index: 1, kind: input, shape index: {}]
  %s2 = inlined_call_operand.hbm [shape: f32[32,128], index: 2, kind: input, shape index: {}]
  %s3 = inlined_call_operand.vmem [shape: f32[1,128], index: 3, kind: input, shape index: {}]
  %s4 = inlined_call_operand.vmem [shape: f32[1,32], index: 4, kind: input, shape index: {}]
  %s5 = inlined_call_operand.vmem [shape: f32[1,32], index: 5, kind: input, shape index: {}]
  %s6 = inlined_call_operand.hbm [shape: f32[2,32], index: 6, kind: output, shape index: {}]
  %s7 = sld [smem:[#allocation0]]
  $region46: #{tpu_custom_call.1} parent=0
    _
  %s9 = ssub.s32 1, %s7
  %s10 = scalar_select 0, %s9, %s7
  $region1: #{tpu_custom_call.1} parent=0
    #allocation3 [shape = 'u8[8192]{0}', space=vmem, size = 0x2000, scoped, tag = 'input window, operand 0, single buffered']
    #allocation4 [shape = 's32[1]{0}', space=sflag, size = 0x4, scoped, tag = 'scoped memory for tpu_custom_call.1']
    #allocation5 [shape = 's32[1]{0}', space=sflag, size = 0x4, scoped, tag = 'scoped memory for tpu_custom_call.1']
    #allocation6 [shape = 'u8[32768]{0}', space=vmem, size = 0x8000, scoped, tag = 'input window, operand 1, single buffered']
    #allocation7 [shape = 's32[1]{0}', space=sflag, size = 0x4, scoped, tag = 'scoped memory for tpu_custom_call.1']
    #allocation8 [shape = 'u8[16384]{0}', space=vmem, size = 0x4000, scoped, tag = 'input window, operand 2, single buffered']
    #allocation9 [shape = 'u8[1024]{0}', space=vmem, size = 0x400, scoped, tag = 'output window, operand 0, single buffered']
    %11 = vsyncpa [#allocation4], 0
    %12 = vsyncpa [#allocation7], 0
    %13 = vsyncpa [#allocation5], 0
    // Predicated region
    $region2: #{tpu_custom_call.1} parent=1 // pred_check
      _
    $region3: #{tpu_custom_call.1} parent=1 // pred_check_branch
      %15 = sbr.rel (0) target = $region5
    $region4: #{tpu_custom_call.1} parent=1 // pred_region
      %s17 = ssub.s32 256, 256
      %18 = vsyncadd [#allocation4], %s17
      %s19 = sshll.u32 [#allocation3], 4
      %s20 = int_to_ptr.vmem [resolvable:$true] %s19
      %25 = dma.hbm_to_vmem [thread:$0]  %s0, 256, %s20, [#allocation4], 128, 128, 8
    $region5: #{tpu_custom_call.1} parent=1 // pred_fallthru
      _
    // Predicated region
    $region6: #{tpu_custom_call.1} parent=1 // pred_check
      _
    $region7: #{tpu_custom_call.1} parent=1 // pred_check_branch
      %27 = sbr.rel (0) target = $region9
    $region8: #{tpu_custom_call.1} parent=1 // pred_region
      %s29 = ssub.s32 1024, 1024
      %30 = vsyncadd [#allocation7], %s29
      %s31 = sshll.u32 [#allocation6], 4
      %s32 = int_to_ptr.vmem [resolvable:$true] %s31
      %37 = dma.hbm_to_vmem [thread:$0]  %s1, 1024, %s32, [#allocation7], 128, 128, 8
    $region9: #{tpu_custom_call.1} parent=1 // pred_fallthru
      _
    // Predicated region
    $region10: #{tpu_custom_call.1} parent=1 // pred_check
      _
    $region11: #{tpu_custom_call.1} parent=1 // pred_check_branch
      %39 = sbr.rel (0) target = $region13
    $region12: #{tpu_custom_call.1} parent=1 // pred_region
      %s41 = ssub.s32 512, 512
      %42 = vsyncadd [#allocation7], %s41
      %s43 = sshll.u32 [#allocation8], 4
      %s44 = int_to_ptr.vmem [resolvable:$true] %s43
      %49 = dma.hbm_to_vmem [thread:$0]  %s2, 512, %s44, [#allocation7], 128, 128, 8
    $region13: #{tpu_custom_call.1} parent=1 // pred_fallthru
      _
    // Predicated region
    $region14: #{tpu_custom_call.1} parent=1 // pred_check
      _
    $region15: #{tpu_custom_call.1} parent=1 // pred_check_branch
      %51 = sbr.rel (0) target = $region17
    $region16: #{tpu_custom_call.1} parent=1 // pred_region
      _
    $region17: #{tpu_custom_call.1} parent=1 // pred_fallthru
      _
    // Predicated region
    $region18: #{tpu_custom_call.1} parent=1 // pred_check
      _
    $region19: #{tpu_custom_call.1} parent=1 // pred_check_branch
      %53 = sbr.rel (0) target = $region21
    $region20: #{tpu_custom_call.1} parent=1 // pred_region
      _
    $region21: #{tpu_custom_call.1} parent=1 // pred_fallthru
      _
    // Predicated region
    $region22: #{tpu_custom_call.1} parent=1 // pred_check
      _
    $region23: #{tpu_custom_call.1} parent=1 // pred_check_branch
      %55 = sbr.rel (0) target = $region25
    $region24: #{tpu_custom_call.1} parent=1 // pred_region
      _
    $region25: #{tpu_custom_call.1} parent=1 // pred_fallthru
      _
    // Predicated region
    $region26: #{tpu_custom_call.1} parent=1 // pred_check
      _
    $region27: #{tpu_custom_call.1} parent=1 // pred_check_branch
      %57 = sbr.rel (0) target = $region29
    $region28: #{tpu_custom_call.1} parent=1 // pred_region
      %58 = dma.done [#allocation4], 256
    $region29: #{tpu_custom_call.1} parent=1 // pred_fallthru
      _
    // Predicated region
    $region30: #{tpu_custom_call.1} parent=1 // pred_check
      _
    $region31: #{tpu_custom_call.1} parent=1 // pred_check_branch
      %60 = sbr.rel (0) target = $region33
    $region32: #{tpu_custom_call.1} parent=1 // pred_region
      %61 = dma.done [#allocation7], 1024
    $region33: #{tpu_custom_call.1} parent=1 // pred_fallthru
      _
    // Predicated region
    $region34: #{tpu_custom_call.1} parent=1 // pred_check
      _
    $region35: #{tpu_custom_call.1} parent=1 // pred_check_branch
      %63 = sbr.rel (0) target = $region37
    $region36: #{tpu_custom_call.1} parent=1 // pred_region
      %64 = dma.done [#allocation7], 512
    $region37: #{tpu_custom_call.1} parent=1 // pred_fallthru
      _
    %v65 = vld [vmem:[#allocation3] sm:$0xff]
    %v66 = vld [vmem:[#allocation3 + $0x8] sm:$0xff]
    %v67 = vld [vmem:[#allocation6] sm:$0xff]
    %v68 = vld [vmem:[#allocation6 + $0x8] sm:$0xff]
    %v69 = vld [vmem:[#allocation6 + $0x10] sm:$0xff]
    %v70 = vld [vmem:[#allocation6 + $0x18] sm:$0xff]
    %v71 = vld [vmem:[#allocation6 + $0x20] sm:$0xff]
    %v72 = vld [vmem:[#allocation6 + $0x28] sm:$0xff]
    %v73 = vld [vmem:[#allocation6 + $0x30] sm:$0xff]
    %v74 = vld [vmem:[#allocation6 + $0x38] sm:$0xf]
    %v75 = vld [vmem:[%s3] sm:$0x1]
    %v77 = vlaneseq
    %v78 = vshrl.u32 %v77, 7
    %v79 = vsub.s32 0, %v78
    %v80 = vrot.slane %v75, %v79
    %vm82 = vcmask 490496
    %v84 = vsel %vm82, %v65, 0
    %v87 = vsel %vm82, %v66, 0
    %vm89 = vcmask 1043456
    %v91 = vsel %vm89, %v74, 0
    %93 = vmatprep.subr.mxu0 0.0
    %94 = vmatpush1.msra.mxu0 0.0
    %95 = vmatprep.subr.mxu0 0.0
    %96 = vmatpush1.msra.mxu0 0.0
    %97 = vmatprep.subr.mxu0 0.0
    %98 = vmatpush1.msra.mxu0 0.0
    %99 = vmatprep.subr.mxu0 0.0
    %100 = vmatpush1.msra.mxu0 0.0
    %101 = vmatprep.subr.mxu0 0.0
    %102 = vmatpush1.msra.mxu0 0.0
    %103 = vmatprep.subr.mxu0 0.0
    %104 = vmatpush1.msra.mxu0 0.0
    %105 = vmatprep.subr.mxu0 0.0
    %106 = vmatpush1.msra.mxu0 0.0
    %107 = vmatprep.subr.mxu0 0.0
    %108 = vmatpush1.msra.mxu0 0.0
    %109 = vmatprep.subr.mxu0 0.0
    %110 = vmatpush1.msra.mxu0 %v91
    %111 = vmatprep.subr.mxu0 0.0
    %112 = vmatpush1.msra.mxu0 %v73
    %113 = vmatprep.subr.mxu0 0.0
    %114 = vmatpush1.msra.mxu0 %v72
    %115 = vmatprep.subr.mxu0 0.0
    %116 = vmatpush1.msra.mxu0 %v71
    %117 = vmatprep.subr.mxu0 0.0
    %118 = vmatpush1.msra.mxu0 %v70
    %119 = vmatprep.subr.mxu0 0.0
    %120 = vmatpush1.msra.mxu0 %v69
    %121 = vmatprep.subr.mxu0 0.0
    %122 = vmatpush1.msra.mxu0 %v68
    %123 = vmatprep.subr.mxu0 0.0
    %124 = vmatpush1.msra.mxu0 %v67
    %125 = vmatprep.subr.mxu0 0.0
    %126 = vmatpush2.msra.mxu0 0.0
    %127 = vmatprep.subr.mxu0 0.0
    %128 = vmatpush2.msra.mxu0 0.0
    %129 = vmatprep.subr.mxu0 0.0
    %130 = vmatpush2.msra.mxu0 0.0
    %131 = vmatprep.subr.mxu0 0.0
    %132 = vmatpush2.msra.mxu0 0.0
    %133 = vmatprep.subr.mxu0 0.0
    %134 = vmatpush2.msra.mxu0 0.0
    %135 = vmatprep.subr.mxu0 0.0
    %136 = vmatpush2.msra.mxu0 0.0
    %137 = vmatprep.subr.mxu0 0.0
    %138 = vmatpush2.msra.mxu0 0.0
    %139 = vmatprep.subr.mxu0 0.0
    %140 = vmatpush2.msra.mxu0 0.0
    %141 = vmatprep.subr.mxu0 0.0
    %142 = vmatpush2.msra.mxu0 0.0
    %143 = vmatprep.subr.mxu0 0.0
    %144 = vmatpush2.msra.mxu0 0.0
    %145 = vmatprep.subr.mxu0 0.0
    %146 = vmatpush2.msra.mxu0 0.0
    %147 = vmatprep.subr.mxu0 0.0
    %148 = vmatpush2.msra.mxu0 0.0
    %149 = vmatprep.subr.mxu0 0.0
    %150 = vmatpush2.msra.mxu0 0.0
    %151 = vmatprep.subr.mxu0 0.0
    %152 = vmatpush2.msra.mxu0 0.0
    %153 = vmatprep.subr.mxu0 0.0
    %154 = vmatpush2.msra.mxu0 0.0
    %155 = vmatprep.subr.mxu0 0.0
    %156 = vmatpush2.msra.mxu0 0.0
    %157 = vmatprep.mubr.f32.mxu0 0.0
    %158 = vmatmul.mubr.f32.gmra.mxu0 %v84
    %v159 = vpop.f32.mrf.mxu0
    %v160 = vadd.f32 %v80, %v159
    %v161 = vpop.f32.mrf.mxu0
    %162 = vmatprep.mubr.f32.mxu0 0.0
    %163 = vmatmul.mubr.f32.gmra.mxu0 %v87
    %v164 = vpop.f32.mrf.mxu0
    %v165 = vadd.f32 %v80, %v164
    %v166 = vpop.f32.mrf.mxu0
    %167 = vdwg.mxu0
    %168 = vst [vmem:[#allocation2] sm:$0xff] %v160
    %169 = vst [vmem:[#allocation2 + $0x8] sm:$0xff] %v165
    %v170 = vld [vmem:[#allocation8] sm:$0xff]
    %v171 = vld [vmem:[#allocation8 + $0x8] sm:$0xff]
    %v172 = vld [vmem:[#allocation8 + $0x10] sm:$0xff]
    %v173 = vld [vmem:[#allocation8 + $0x18] sm:$0xff]
    %v174 = vld [vmem:[#allocation2] sm:$0x3]
    %vm175 = vcmask 261120
    %v177 = vsel %vm175, 0.0, 0
    %179 = vmatprep.subr.mxu0 0.0
    %180 = vmatpush1.msra.mxu0 0.0
    %181 = vmatprep.subr.mxu0 0.0
    %182 = vmatpush1.msra.mxu0 0.0
    %183 = vmatprep.subr.mxu0 0.0
    %184 = vmatpush1.msra.mxu0 0.0
    %185 = vmatprep.subr.mxu0 0.0
    %186 = vmatpush1.msra.mxu0 0.0
    %187 = vmatprep.subr.mxu0 0.0
    %188 = vmatpush1.msra.mxu0 0.0
    %189 = vmatprep.subr.mxu0 0.0
    %190 = vmatpush1.msra.mxu0 0.0
    %191 = vmatprep.subr.mxu0 0.0
    %192 = vmatpush1.msra.mxu0 0.0
    %193 = vmatprep.subr.mxu0 0.0
    %194 = vmatpush1.msra.mxu0 0.0
    %195 = vmatprep.subr.mxu0 0.0
    %196 = vmatpush1.msra.mxu0 0.0
    %197 = vmatprep.subr.mxu0 0.0
    %198 = vmatpush1.msra.mxu0 0.0
    %199 = vmatprep.subr.mxu0 0.0
    %200 = vmatpush1.msra.mxu0 0.0
    %201 = vmatprep.subr.mxu0 0.0
    %202 = vmatpush1.msra.mxu0 0.0
    %203 = vmatprep.subr.mxu0 0.0
    %204 = vmatpush1.msra.mxu0 %v173
    %205 = vmatprep.subr.mxu0 0.0
    %206 = vmatpush1.msra.mxu0 %v172
    %207 = vmatprep.subr.mxu0 0.0
    %208 = vmatpush1.msra.mxu0 %v171
    %209 = vmatprep.subr.mxu0 0.0
    %210 = vmatpush1.msra.mxu0 %v170
    %211 = vmatprep.subr.mxu0 0.0
    %212 = vmatpush2.msra.mxu0 0.0
    %213 = vmatprep.subr.mxu0 0.0
    %214 = vmatpush2.msra.mxu0 0.0
    %215 = vmatprep.subr.mxu0 0.0
    %216 = vmatpush2.msra.mxu0 0.0
    %217 = vmatprep.subr.mxu0 0.0
    %218 = vmatpush2.msra.mxu0 0.0
    %219 = vmatprep.subr.mxu0 0.0
    %220 = vmatpush2.msra.mxu0 0.0
    %221 = vmatprep.subr.mxu0 0.0
    %222 = vmatpush2.msra.mxu0 0.0
    %223 = vmatprep.subr.mxu0 0.0
    %224 = vmatpush2.msra.mxu0 0.0
    %225 = vmatprep.subr.mxu0 0.0
    %226 = vmatpush2.msra.mxu0 0.0
    %227 = vmatprep.subr.mxu0 0.0
    %228 = vmatpush2.msra.mxu0 0.0
    %229 = vmatprep.subr.mxu0 0.0
    %230 = vmatpush2.msra.mxu0 0.0
    %231 = vmatprep.subr.mxu0 0.0
    %232 = vmatpush2.msra.mxu0 0.0
    %233 = vmatprep.subr.mxu0 0.0
    %234 = vmatpush2.msra.mxu0 0.0
    %235 = vmatprep.subr.mxu0 0.0
    %236 = vmatpush2.msra.mxu0 0.0
    %237 = vmatprep.subr.mxu0 0.0
    %238 = vmatpush2.msra.mxu0 0.0
    %239 = vmatprep.subr.mxu0 0.0
    %240 = vmatpush2.msra.mxu0 0.0
    %241 = vmatprep.subr.mxu0 0.0
    %242 = vmatpush2.msra.mxu0 0.0
    %243 = vmatprep.mubr.f32.mxu0 0.0
    %244 = vmatmul.mubr.f32.gmra.mxu0 %v177
    %v245 = vpop.f32.mrf.mxu0
    %v246 = vadd.f32 0.0, %v245
    %v247 = vpop.f32.mrf.mxu0
    %248 = vdwg.mxu0
    %v249 = vadd.f32 %v174, %v246
    %v250 = vxor.u32 %v249, 2147483648
    %v251 = vmul.f32 %v250, 1.442695
    %v252 = vpow.pop %v251
    %v253 = vadd.f32 %v252, 1.0
    %v254 = vrcp.pop %v253
    %v255 = vmul.f32 1.0, %v254
    %v256 = vtanh.pop %v249
    %v257 = vmul.f32 %v255, 0.0
    %259 = vrot.lane.b32.xlu0 %v256, 64
    %v260 = vpop.permute.xlu0 %259
    %v262 = vmul.f32 %v255, %v260
    %264 = vrot.lane.b32.xlu0 %v262, 32
    %v265 = vpop.permute.xlu0 %264
    %v267 = vadd.f32 %v257, %v265
    %v268 = vtanh.pop %v267
    %270 = vrot.lane.b32.xlu0 %v268, 64
    %v271 = vpop.permute.xlu0 %270
    %v273 = vmul.f32 %v255, %v271
    %s274 = scalar_lea.vmem [#allocation2], 2
    %v275 = vld [vmem:[%s274] sm:$0x3]
    %277 = vrot.lane.b32.xlu0 %v273, 32
    %v278 = vpop.permute.xlu0 %277
    %v279 = vsel %vm175, %v278, 0
    %281 = vmatprep.subr.mxu0 0.0
    %282 = vmatpush1.msra.mxu0 0.0
    %283 = vmatprep.subr.mxu0 0.0
    %284 = vmatpush1.msra.mxu0 0.0
    %285 = vmatprep.subr.mxu0 0.0
    %286 = vmatpush1.msra.mxu0 0.0
    %287 = vmatprep.subr.mxu0 0.0
    %288 = vmatpush1.msra.mxu0 0.0
    %289 = vmatprep.subr.mxu0 0.0
    %290 = vmatpush1.msra.mxu0 0.0
    %291 = vmatprep.subr.mxu0 0.0
    %292 = vmatpush1.msra.mxu0 0.0
    %293 = vmatprep.subr.mxu0 0.0
    %294 = vmatpush1.msra.mxu0 0.0
    %295 = vmatprep.subr.mxu0 0.0
    %296 = vmatpush1.msra.mxu0 0.0
    %297 = vmatprep.subr.mxu0 0.0
    %298 = vmatpush1.msra.mxu0 0.0
    %299 = vmatprep.subr.mxu0 0.0
    %300 = vmatpush1.msra.mxu0 0.0
    %301 = vmatprep.subr.mxu0 0.0
    %302 = vmatpush1.msra.mxu0 0.0
    %303 = vmatprep.subr.mxu0 0.0
    %304 = vmatpush1.msra.mxu0 0.0
    %305 = vmatprep.subr.mxu0 0.0
    %306 = vmatpush1.msra.mxu0 %v173
    %307 = vmatprep.subr.mxu0 0.0
    %308 = vmatpush1.msra.mxu0 %v172
    %309 = vmatprep.subr.mxu0 0.0
    %310 = vmatpush1.msra.mxu0 %v171
    %311 = vmatprep.subr.mxu0 0.0
    %312 = vmatpush1.msra.mxu0 %v170
    %313 = vmatprep.subr.mxu0 0.0
    %314 = vmatpush2.msra.mxu0 0.0
    %315 = vmatprep.subr.mxu0 0.0
    %316 = vmatpush2.msra.mxu0 0.0
    %317 = vmatprep.subr.mxu0 0.0
    %318 = vmatpush2.msra.mxu0 0.0
    %319 = vmatprep.subr.mxu0 0.0
    %320 = vmatpush2.msra.mxu0 0.0
    %321 = vmatprep.subr.mxu0 0.0
    %322 = vmatpush2.msra.mxu0 0.0
    %323 = vmatprep.subr.mxu0 0.0
    %324 = vmatpush2.msra.mxu0 0.0
    %325 = vmatprep.subr.mxu0 0.0
    %326 = vmatpush2.msra.mxu0 0.0
    %327 = vmatprep.subr.mxu0 0.0
    %328 = vmatpush2.msra.mxu0 0.0
    %329 = vmatprep.subr.mxu0 0.0
    %330 = vmatpush2.msra.mxu0 0.0
    %331 = vmatprep.subr.mxu0 0.0
    %332 = vmatpush2.msra.mxu0 0.0
    %333 = vmatprep.subr.mxu0 0.0
    %334 = vmatpush2.msra.mxu0 0.0
    %335 = vmatprep.subr.mxu0 0.0
    %336 = vmatpush2.msra.mxu0 0.0
    %337 = vmatprep.subr.mxu0 0.0
    %338 = vmatpush2.msra.mxu0 0.0
    %339 = vmatprep.subr.mxu0 0.0
    %340 = vmatpush2.msra.mxu0 0.0
    %341 = vmatprep.subr.mxu0 0.0
    %342 = vmatpush2.msra.mxu0 0.0
    %343 = vmatprep.subr.mxu0 0.0
    %344 = vmatpush2.msra.mxu0 0.0
    %345 = vmatprep.mubr.f32.mxu0 0.0
    %346 = vmatmul.mubr.f32.gmra.mxu0 %v279
    %v347 = vpop.f32.mrf.mxu0
    %v348 = vadd.f32 0.0, %v347
    %v349 = vpop.f32.mrf.mxu0
    %350 = vdwg.mxu0
    %v351 = vadd.f32 %v275, %v348
    %v352 = vxor.u32 %v351, 2147483648
    %v353 = vmul.f32 %v352, 1.442695
    %v354 = vpow.pop %v353
    %v355 = vadd.f32 %v354, 1.0
    %v356 = vrcp.pop %v355
    %v357 = vmul.f32 1.0, %v356
    %v358 = vtanh.pop %v351
    %v359 = vmul.f32 %v357, %v267
    %361 = vrot.lane.b32.xlu0 %v358, 64
    %v362 = vpop.permute.xlu0 %361
    %v364 = vmul.f32 %v357, %v362
    %366 = vrot.lane.b32.xlu0 %v364, 32
    %v367 = vpop.permute.xlu0 %366
    %v369 = vadd.f32 %v359, %v367
    %v370 = vtanh.pop %v369
    %372 = vrot.lane.b32.xlu0 %v370, 64
    %v373 = vpop.permute.xlu0 %372
    %v375 = vmul.f32 %v357, %v373
    %s376 = scalar_lea.vmem [#allocation2], 4
    %v377 = vld [vmem:[%s376] sm:$0x3]
    %379 = vrot.lane.b32.xlu0 %v375, 32
    %v380 = vpop.permute.xlu0 %379
    %v381 = vsel %vm175, %v380, 0
    %383 = vmatprep.subr.mxu0 0.0
    %384 = vmatpush1.msra.mxu0 0.0
    %385 = vmatprep.subr.mxu0 0.0
    %386 = vmatpush1.msra.mxu0 0.0
    %387 = vmatprep.subr.mxu0 0.0
    %388 = vmatpush1.msra.mxu0 0.0
    %389 = vmatprep.subr.mxu0 0.0
    %390 = vmatpush1.msra.mxu0 0.0
    %391 = vmatprep.subr.mxu0 0.0
    %392 = vmatpush1.msra.mxu0 0.0
    %393 = vmatprep.subr.mxu0 0.0
    %394 = vmatpush1.msra.mxu0 0.0
    %395 = vmatprep.subr.mxu0 0.0
    %396 = vmatpush1.msra.mxu0 0.0
    %397 = vmatprep.subr.mxu0 0.0
    %398 = vmatpush1.msra.mxu0 0.0
    %399 = vmatprep.subr.mxu0 0.0
    %400 = vmatpush1.msra.mxu0 0.0
    %401 = vmatprep.subr.mxu0 0.0
    %402 = vmatpush1.msra.mxu0 0.0
    %403 = vmatprep.subr.mxu0 0.0
    %404 = vmatpush1.msra.mxu0 0.0
    %405 = vmatprep.subr.mxu0 0.0
    %406 = vmatpush1.msra.mxu0 0.0
    %407 = vmatprep.subr.mxu0 0.0
    %408 = vmatpush1.msra.mxu0 %v173
    %409 = vmatprep.subr.mxu0 0.0
    %410 = vmatpush1.msra.mxu0 %v172
    %411 = vmatprep.subr.mxu0 0.0
    %412 = vmatpush1.msra.mxu0 %v171
    %413 = vmatprep.subr.mxu0 0.0
    %414 = vmatpush1.msra.mxu0 %v170
    %415 = vmatprep.subr.mxu0 0.0
    %416 = vmatpush2.msra.mxu0 0.0
    %417 = vmatprep.subr.mxu0 0.0
    %418 = vmatpush2.msra.mxu0 0.0
    %419 = vmatprep.subr.mxu0 0.0
    %420 = vmatpush2.msra.mxu0 0.0
    %421 = vmatprep.subr.mxu0 0.0
    %422 = vmatpush2.msra.mxu0 0.0
    %423 = vmatprep.subr.mxu0 0.0
    %424 = vmatpush2.msra.mxu0 0.0
    %425 = vmatprep.subr.mxu0 0.0
    %426 = vmatpush2.msra.mxu0 0.0
    %427 = vmatprep.subr.mxu0 0.0
    %428 = vmatpush2.msra.mxu0 0.0
    %429 = vmatprep.subr.mxu0 0.0
    %430 = vmatpush2.msra.mxu0 0.0
    %431 = vmatprep.subr.mxu0 0.0
    %432 = vmatpush2.msra.mxu0 0.0
    %433 = vmatprep.subr.mxu0 0.0
    %434 = vmatpush2.msra.mxu0 0.0
    %435 = vmatprep.subr.mxu0 0.0
    %436 = vmatpush2.msra.mxu0 0.0
    %437 = vmatprep.subr.mxu0 0.0
    %438 = vmatpush2.msra.mxu0 0.0
    %439 = vmatprep.subr.mxu0 0.0
    %440 = vmatpush2.msra.mxu0 0.0
    %441 = vmatprep.subr.mxu0 0.0
    %442 = vmatpush2.msra.mxu0 0.0
    %443 = vmatprep.subr.mxu0 0.0
    %444 = vmatpush2.msra.mxu0 0.0
    %445 = vmatprep.subr.mxu0 0.0
    %446 = vmatpush2.msra.mxu0 0.0
    %447 = vmatprep.mubr.f32.mxu0 0.0
    %448 = vmatmul.mubr.f32.gmra.mxu0 %v381
    %v449 = vpop.f32.mrf.mxu0
    %v450 = vadd.f32 0.0, %v449
    %v451 = vpop.f32.mrf.mxu0
    %452 = vdwg.mxu0
    %v453 = vadd.f32 %v377, %v450
    %v454 = vxor.u32 %v453, 2147483648
    %v455 = vmul.f32 %v454, 1.442695
    %v456 = vpow.pop %v455
    %v457 = vadd.f32 %v456, 1.0
    %v458 = vrcp.pop %v457
    %v459 = vmul.f32 1.0, %v458
    %v460 = vtanh.pop %v453
    %v461 = vmul.f32 %v459, %v369
    %463 = vrot.lane.b32.xlu0 %v460, 64
    %v464 = vpop.permute.xlu0 %463
    %v466 = vmul.f32 %v459, %v464
    %468 = vrot.lane.b32.xlu0 %v466, 32
    %v469 = vpop.permute.xlu0 %468
    %v471 = vadd.f32 %v461, %v469
    %v472 = vtanh.pop %v471
    %474 = vrot.lane.b32.xlu0 %v472, 64
    %v475 = vpop.permute.xlu0 %474
    %v477 = vmul.f32 %v459, %v475
    %s478 = scalar_lea.vmem [#allocation2], 6
    %v479 = vld [vmem:[%s478] sm:$0x3]
    %481 = vrot.lane.b32.xlu0 %v477, 32
    %v482 = vpop.permute.xlu0 %481
    %v483 = vsel %vm175, %v482, 0
    %485 = vmatprep.subr.mxu0 0.0
    %486 = vmatpush1.msra.mxu0 0.0
    %487 = vmatprep.subr.mxu0 0.0
    %488 = vmatpush1.msra.mxu0 0.0
    %489 = vmatprep.subr.mxu0 0.0
    %490 = vmatpush1.msra.mxu0 0.0
    %491 = vmatprep.subr.mxu0 0.0
    %492 = vmatpush1.msra.mxu0 0.0
    %493 = vmatprep.subr.mxu0 0.0
    %494 = vmatpush1.msra.mxu0 0.0
    %495 = vmatprep.subr.mxu0 0.0
    %496 = vmatpush1.msra.mxu0 0.0
    %497 = vmatprep.subr.mxu0 0.0
    %498 = vmatpush1.msra.mxu0 0.0
    %499 = vmatprep.subr.mxu0 0.0
    %500 = vmatpush1.msra.mxu0 0.0
    %501 = vmatprep.subr.mxu0 0.0
    %502 = vmatpush1.msra.mxu0 0.0
    %503 = vmatprep.subr.mxu0 0.0
    %504 = vmatpush1.msra.mxu0 0.0
    %505 = vmatprep.subr.mxu0 0.0
    %506 = vmatpush1.msra.mxu0 0.0
    %507 = vmatprep.subr.mxu0 0.0
    %508 = vmatpush1.msra.mxu0 0.0
    %509 = vmatprep.subr.mxu0 0.0
    %510 = vmatpush1.msra.mxu0 %v173
    %511 = vmatprep.subr.mxu0 0.0
    %512 = vmatpush1.msra.mxu0 %v172
    %513 = vmatprep.subr.mxu0 0.0
    %514 = vmatpush1.msra.mxu0 %v171
    %515 = vmatprep.subr.mxu0 0.0
    %516 = vmatpush1.msra.mxu0 %v170
    %517 = vmatprep.subr.mxu0 0.0
    %518 = vmatpush2.msra.mxu0 0.0
    %519 = vmatprep.subr.mxu0 0.0
    %520 = vmatpush2.msra.mxu0 0.0
    %521 = vmatprep.subr.mxu0 0.0
    %522 = vmatpush2.msra.mxu0 0.0
    %523 = vmatprep.subr.mxu0 0.0
    %524 = vmatpush2.msra.mxu0 0.0
    %525 = vmatprep.subr.mxu0 0.0
    %526 = vmatpush2.msra.mxu0 0.0
    %527 = vmatprep.subr.mxu0 0.0
    %528 = vmatpush2.msra.mxu0 0.0
    %529 = vmatprep.subr.mxu0 0.0
    %530 = vmatpush2.msra.mxu0 0.0
    %531 = vmatprep.subr.mxu0 0.0
    %532 = vmatpush2.msra.mxu0 0.0
    %533 = vmatprep.subr.mxu0 0.0
    %534 = vmatpush2.msra.mxu0 0.0
    %535 = vmatprep.subr.mxu0 0.0
    %536 = vmatpush2.msra.mxu0 0.0
    %537 = vmatprep.subr.mxu0 0.0
    %538 = vmatpush2.msra.mxu0 0.0
    %539 = vmatprep.subr.mxu0 0.0
    %540 = vmatpush2.msra.mxu0 0.0
    %541 = vmatprep.subr.mxu0 0.0
    %542 = vmatpush2.msra.mxu0 0.0
    %543 = vmatprep.subr.mxu0 0.0
    %544 = vmatpush2.msra.mxu0 0.0
    %545 = vmatprep.subr.mxu0 0.0
    %546 = vmatpush2.msra.mxu0 0.0
    %547 = vmatprep.subr.mxu0 0.0
    %548 = vmatpush2.msra.mxu0 0.0
    %549 = vmatprep.mubr.f32.mxu0 0.0
    %550 = vmatmul.mubr.f32.gmra.mxu0 %v483
    %v551 = vpop.f32.mrf.mxu0
    %v552 = vadd.f32 0.0, %v551
    %v553 = vpop.f32.mrf.mxu0
    %554 = vdwg.mxu0
    %v555 = vadd.f32 %v479, %v552
    %v556 = vxor.u32 %v555, 2147483648
    %v557 = vmul.f32 %v556, 1.442695
    %v558 = vpow.pop %v557
    %v559 = vadd.f32 %v558, 1.0
    %v560 = vrcp.pop %v559
    %v561 = vmul.f32 1.0, %v560
    %v562 = vtanh.pop %v555
    %v563 = vmul.f32 %v561, %v471
    %565 = vrot.lane.b32.xlu0 %v562, 64
    %v566 = vpop.permute.xlu0 %565
    %v568 = vmul.f32 %v561, %v566
    %570 = vrot.lane.b32.xlu0 %v568, 32
    %v571 = vpop.permute.xlu0 %570
    %v573 = vadd.f32 %v563, %v571
    %v574 = vtanh.pop %v573
    %576 = vrot.lane.b32.xlu0 %v574, 64
    %v577 = vpop.permute.xlu0 %576
    %v579 = vmul.f32 %v561, %v577
    %s580 = scalar_lea.vmem [#allocation2], 8
    %v581 = vld [vmem:[%s580] sm:$0x3]
    %583 = vrot.lane.b32.xlu0 %v579, 32
    %v584 = vpop.permute.xlu0 %583
    %v585 = vsel %vm175, %v584, 0
    %587 = vmatprep.subr.mxu0 0.0
    %588 = vmatpush1.msra.mxu0 0.0
    %589 = vmatprep.subr.mxu0 0.0
    %590 = vmatpush1.msra.mxu0 0.0
    %591 = vmatprep.subr.mxu0 0.0
    %592 = vmatpush1.msra.mxu0 0.0
    %593 = vmatprep.subr.mxu0 0.0
    %594 = vmatpush1.msra.mxu0 0.0
    %595 = vmatprep.subr.mxu0 0.0
    %596 = vmatpush1.msra.mxu0 0.0
    %597 = vmatprep.subr.mxu0 0.0
    %598 = vmatpush1.msra.mxu0 0.0
    %599 = vmatprep.subr.mxu0 0.0
    %600 = vmatpush1.msra.mxu0 0.0
    %601 = vmatprep.subr.mxu0 0.0
    %602 = vmatpush1.msra.mxu0 0.0
    %603 = vmatprep.subr.mxu0 0.0
    %604 = vmatpush1.msra.mxu0 0.0
    %605 = vmatprep.subr.mxu0 0.0
    %606 = vmatpush1.msra.mxu0 0.0
    %607 = vmatprep.subr.mxu0 0.0
    %608 = vmatpush1.msra.mxu0 0.0
    %609 = vmatprep.subr.mxu0 0.0
    %610 = vmatpush1.msra.mxu0 0.0
    %611 = vmatprep.subr.mxu0 0.0
    %612 = vmatpush1.msra.mxu0 %v173
    %613 = vmatprep.subr.mxu0 0.0
    %614 = vmatpush1.msra.mxu0 %v172
    %615 = vmatprep.subr.mxu0 0.0
    %616 = vmatpush1.msra.mxu0 %v171
    %617 = vmatprep.subr.mxu0 0.0
    %618 = vmatpush1.msra.mxu0 %v170
    %619 = vmatprep.subr.mxu0 0.0
    %620 = vmatpush2.msra.mxu0 0.0
    %621 = vmatprep.subr.mxu0 0.0
    %622 = vmatpush2.msra.mxu0 0.0
    %623 = vmatprep.subr.mxu0 0.0
    %624 = vmatpush2.msra.mxu0 0.0
    %625 = vmatprep.subr.mxu0 0.0
    %626 = vmatpush2.msra.mxu0 0.0
    %627 = vmatprep.subr.mxu0 0.0
    %628 = vmatpush2.msra.mxu0 0.0
    %629 = vmatprep.subr.mxu0 0.0
    %630 = vmatpush2.msra.mxu0 0.0
    %631 = vmatprep.subr.mxu0 0.0
    %632 = vmatpush2.msra.mxu0 0.0
    %633 = vmatprep.subr.mxu0 0.0
    %634 = vmatpush2.msra.mxu0 0.0
    %635 = vmatprep.subr.mxu0 0.0
    %636 = vmatpush2.msra.mxu0 0.0
    %637 = vmatprep.subr.mxu0 0.0
    %638 = vmatpush2.msra.mxu0 0.0
    %639 = vmatprep.subr.mxu0 0.0
    %640 = vmatpush2.msra.mxu0 0.0
    %641 = vmatprep.subr.mxu0 0.0
    %642 = vmatpush2.msra.mxu0 0.0
    %643 = vmatprep.subr.mxu0 0.0
    %644 = vmatpush2.msra.mxu0 0.0
    %645 = vmatprep.subr.mxu0 0.0
    %646 = vmatpush2.msra.mxu0 0.0
    %647 = vmatprep.subr.mxu0 0.0
    %648 = vmatpush2.msra.mxu0 0.0
    %649 = vmatprep.subr.mxu0 0.0
    %650 = vmatpush2.msra.mxu0 0.0
    %651 = vmatprep.mubr.f32.mxu0 0.0
    %652 = vmatmul.mubr.f32.gmra.mxu0 %v585
    %v653 = vpop.f32.mrf.mxu0
    %v654 = vadd.f32 0.0, %v653
    %v655 = vpop.f32.mrf.mxu0
    %656 = vdwg.mxu0
    %v657 = vadd.f32 %v581, %v654
    %v658 = vxor.u32 %v657, 2147483648
    %v659 = vmul.f32 %v658, 1.442695
    %v660 = vpow.pop %v659
    %v661 = vadd.f32 %v660, 1.0
    %v662 = vrcp.pop %v661
    %v663 = vmul.f32 1.0, %v662
    %v664 = vtanh.pop %v657
    %v665 = vmul.f32 %v663, %v573
    %667 = vrot.lane.b32.xlu0 %v664, 64
    %v668 = vpop.permute.xlu0 %667
    %v670 = vmul.f32 %v663, %v668
    %672 = vrot.lane.b32.xlu0 %v670, 32
    %v673 = vpop.permute.xlu0 %672
    %v675 = vadd.f32 %v665, %v673
    %v676 = vtanh.pop %v675
    %678 = vrot.lane.b32.xlu0 %v676, 64
    %v679 = vpop.permute.xlu0 %678
    %v681 = vmul.f32 %v663, %v679
    %s682 = scalar_lea.vmem [#allocation2], 10
    %v683 = vld [vmem:[%s682] sm:$0x3]
    %685 = vrot.lane.b32.xlu0 %v681, 32
    %v686 = vpop.permute.xlu0 %685
    %v687 = vsel %vm175, %v686, 0
    %689 = vmatprep.subr.mxu0 0.0
    %690 = vmatpush1.msra.mxu0 0.0
    %691 = vmatprep.subr.mxu0 0.0
    %692 = vmatpush1.msra.mxu0 0.0
    %693 = vmatprep.subr.mxu0 0.0
    %694 = vmatpush1.msra.mxu0 0.0
    %695 = vmatprep.subr.mxu0 0.0
    %696 = vmatpush1.msra.mxu0 0.0
    %697 = vmatprep.subr.mxu0 0.0
    %698 = vmatpush1.msra.mxu0 0.0
    %699 = vmatprep.subr.mxu0 0.0
    %700 = vmatpush1.msra.mxu0 0.0
    %701 = vmatprep.subr.mxu0 0.0
    %702 = vmatpush1.msra.mxu0 0.0
    %703 = vmatprep.subr.mxu0 0.0
    %704 = vmatpush1.msra.mxu0 0.0
    %705 = vmatprep.subr.mxu0 0.0
    %706 = vmatpush1.msra.mxu0 0.0
    %707 = vmatprep.subr.mxu0 0.0
    %708 = vmatpush1.msra.mxu0 0.0
    %709 = vmatprep.subr.mxu0 0.0
    %710 = vmatpush1.msra.mxu0 0.0
    %711 = vmatprep.subr.mxu0 0.0
    %712 = vmatpush1.msra.mxu0 0.0
    %713 = vmatprep.subr.mxu0 0.0
    %714 = vmatpush1.msra.mxu0 %v173
    %715 = vmatprep.subr.mxu0 0.0
    %716 = vmatpush1.msra.mxu0 %v172
    %717 = vmatprep.subr.mxu0 0.0
    %718 = vmatpush1.msra.mxu0 %v171
    %719 = vmatprep.subr.mxu0 0.0
    %720 = vmatpush1.msra.mxu0 %v170
    %721 = vmatprep.subr.mxu0 0.0
    %722 = vmatpush2.msra.mxu0 0.0
    %723 = vmatprep.subr.mxu0 0.0
    %724 = vmatpush2.msra.mxu0 0.0
    %725 = vmatprep.subr.mxu0 0.0
    %726 = vmatpush2.msra.mxu0 0.0
    %727 = vmatprep.subr.mxu0 0.0
    %728 = vmatpush2.msra.mxu0 0.0
    %729 = vmatprep.subr.mxu0 0.0
    %730 = vmatpush2.msra.mxu0 0.0
    %731 = vmatprep.subr.mxu0 0.0
    %732 = vmatpush2.msra.mxu0 0.0
    %733 = vmatprep.subr.mxu0 0.0
    %734 = vmatpush2.msra.mxu0 0.0
    %735 = vmatprep.subr.mxu0 0.0
    %736 = vmatpush2.msra.mxu0 0.0
    %737 = vmatprep.subr.mxu0 0.0
    %738 = vmatpush2.msra.mxu0 0.0
    %739 = vmatprep.subr.mxu0 0.0
    %740 = vmatpush2.msra.mxu0 0.0
    %741 = vmatprep.subr.mxu0 0.0
    %742 = vmatpush2.msra.mxu0 0.0
    %743 = vmatprep.subr.mxu0 0.0
    %744 = vmatpush2.msra.mxu0 0.0
    %745 = vmatprep.subr.mxu0 0.0
    %746 = vmatpush2.msra.mxu0 0.0
    %747 = vmatprep.subr.mxu0 0.0
    %748 = vmatpush2.msra.mxu0 0.0
    %749 = vmatprep.subr.mxu0 0.0
    %750 = vmatpush2.msra.mxu0 0.0
    %751 = vmatprep.subr.mxu0 0.0
    %752 = vmatpush2.msra.mxu0 0.0
    %753 = vmatprep.mubr.f32.mxu0 0.0
    %754 = vmatmul.mubr.f32.gmra.mxu0 %v687
    %v755 = vpop.f32.mrf.mxu0
    %v756 = vadd.f32 0.0, %v755
    %v757 = vpop.f32.mrf.mxu0
    %758 = vdwg.mxu0
    %v759 = vadd.f32 %v683, %v756
    %v760 = vxor.u32 %v759, 2147483648
    %v761 = vmul.f32 %v760, 1.442695
    %v762 = vpow.pop %v761
    %v763 = vadd.f32 %v762, 1.0
    %v764 = vrcp.pop %v763
    %v765 = vmul.f32 1.0, %v764
    %v766 = vtanh.pop %v759
    %v767 = vmul.f32 %v765, %v675
    %769 = vrot.lane.b32.xlu0 %v766, 64
    %v770 = vpop.permute.xlu0 %769
    %v772 = vmul.f32 %v765, %v770
    %774 = vrot.lane.b32.xlu0 %v772, 32
    %v775 = vpop.permute.xlu0 %774
    %v777 = vadd.f32 %v767, %v775
    %v778 = vtanh.pop %v777
    %780 = vrot.lane.b32.xlu0 %v778, 64
    %v781 = vpop.permute.xlu0 %780
    %v783 = vmul.f32 %v765, %v781
    %s784 = scalar_lea.vmem [#allocation2], 12
    %v785 = vld [vmem:[%s784] sm:$0x3]
    %787 = vrot.lane.b32.xlu0 %v783, 32
    %v788 = vpop.permute.xlu0 %787
    %v789 = vsel %vm175, %v788, 0
    %791 = vmatprep.subr.mxu0 0.0
    %792 = vmatpush1.msra.mxu0 0.0
    %793 = vmatprep.subr.mxu0 0.0
    %794 = vmatpush1.msra.mxu0 0.0
    %795 = vmatprep.subr.mxu0 0.0
    %796 = vmatpush1.msra.mxu0 0.0
    %797 = vmatprep.subr.mxu0 0.0
    %798 = vmatpush1.msra.mxu0 0.0
    %799 = vmatprep.subr.mxu0 0.0
    %800 = vmatpush1.msra.mxu0 0.0
    %801 = vmatprep.subr.mxu0 0.0
    %802 = vmatpush1.msra.mxu0 0.0
    %803 = vmatprep.subr.mxu0 0.0
    %804 = vmatpush1.msra.mxu0 0.0
    %805 = vmatprep.subr.mxu0 0.0
    %806 = vmatpush1.msra.mxu0 0.0
    %807 = vmatprep.subr.mxu0 0.0
    %808 = vmatpush1.msra.mxu0 0.0
    %809 = vmatprep.subr.mxu0 0.0
    %810 = vmatpush1.msra.mxu0 0.0
    %811 = vmatprep.subr.mxu0 0.0
    %812 = vmatpush1.msra.mxu0 0.0
    %813 = vmatprep.subr.mxu0 0.0
    %814 = vmatpush1.msra.mxu0 0.0
    %815 = vmatprep.subr.mxu0 0.0
    %816 = vmatpush1.msra.mxu0 %v173
    %817 = vmatprep.subr.mxu0 0.0
    %818 = vmatpush1.msra.mxu0 %v172
    %819 = vmatprep.subr.mxu0 0.0
    %820 = vmatpush1.msra.mxu0 %v171
    %821 = vmatprep.subr.mxu0 0.0
    %822 = vmatpush1.msra.mxu0 %v170
    %823 = vmatprep.subr.mxu0 0.0
    %824 = vmatpush2.msra.mxu0 0.0
    %825 = vmatprep.subr.mxu0 0.0
    %826 = vmatpush2.msra.mxu0 0.0
    %827 = vmatprep.subr.mxu0 0.0
    %828 = vmatpush2.msra.mxu0 0.0
    %829 = vmatprep.subr.mxu0 0.0
    %830 = vmatpush2.msra.mxu0 0.0
    %831 = vmatprep.subr.mxu0 0.0
    %832 = vmatpush2.msra.mxu0 0.0
    %833 = vmatprep.subr.mxu0 0.0
    %834 = vmatpush2.msra.mxu0 0.0
    %835 = vmatprep.subr.mxu0 0.0
    %836 = vmatpush2.msra.mxu0 0.0
    %837 = vmatprep.subr.mxu0 0.0
    %838 = vmatpush2.msra.mxu0 0.0
    %839 = vmatprep.subr.mxu0 0.0
    %840 = vmatpush2.msra.mxu0 0.0
    %841 = vmatprep.subr.mxu0 0.0
    %842 = vmatpush2.msra.mxu0 0.0
    %843 = vmatprep.subr.mxu0 0.0
    %844 = vmatpush2.msra.mxu0 0.0
    %845 = vmatprep.subr.mxu0 0.0
    %846 = vmatpush2.msra.mxu0 0.0
    %847 = vmatprep.subr.mxu0 0.0
    %848 = vmatpush2.msra.mxu0 0.0
    %849 = vmatprep.subr.mxu0 0.0
    %850 = vmatpush2.msra.mxu0 0.0
    %851 = vmatprep.subr.mxu0 0.0
    %852 = vmatpush2.msra.mxu0 0.0
    %853 = vmatprep.subr.mxu0 0.0
    %854 = vmatpush2.msra.mxu0 0.0
    %855 = vmatprep.mubr.f32.mxu0 0.0
    %856 = vmatmul.mubr.f32.gmra.mxu0 %v789
    %v857 = vpop.f32.mrf.mxu0
    %v858 = vadd.f32 0.0, %v857
    %v859 = vpop.f32.mrf.mxu0
    %860 = vdwg.mxu0
    %v861 = vadd.f32 %v785, %v858
    %v862 = vxor.u32 %v861, 2147483648
    %v863 = vmul.f32 %v862, 1.442695
    %v864 = vpow.pop %v863
    %v865 = vadd.f32 %v864, 1.0
    %v866 = vrcp.pop %v865
    %v867 = vmul.f32 1.0, %v866
    %v868 = vtanh.pop %v861
    %v869 = vmul.f32 %v867, %v777
    %871 = vrot.lane.b32.xlu0 %v868, 64
    %v872 = vpop.permute.xlu0 %871
    %v874 = vmul.f32 %v867, %v872
    %876 = vrot.lane.b32.xlu0 %v874, 32
    %v877 = vpop.permute.xlu0 %876
    %v879 = vadd.f32 %v869, %v877
    %v880 = vtanh.pop %v879
    %882 = vrot.lane.b32.xlu0 %v880, 64
    %v883 = vpop.permute.xlu0 %882
    %v885 = vmul.f32 %v867, %v883
    %s886 = scalar_lea.vmem [#allocation2], 14
    %v887 = vld [vmem:[%s886] sm:$0x3]
    %889 = vrot.lane.b32.xlu0 %v885, 32
    %v890 = vpop.permute.xlu0 %889
    %v891 = vsel %vm175, %v890, 0
    %893 = vmatprep.subr.mxu0 0.0
    %894 = vmatpush1.msra.mxu0 0.0
    %895 = vmatprep.subr.mxu0 0.0
    %896 = vmatpush1.msra.mxu0 0.0
    %897 = vmatprep.subr.mxu0 0.0
    %898 = vmatpush1.msra.mxu0 0.0
    %899 = vmatprep.subr.mxu0 0.0
    %900 = vmatpush1.msra.mxu0 0.0
    %901 = vmatprep.subr.mxu0 0.0
    %902 = vmatpush1.msra.mxu0 0.0
    %903 = vmatprep.subr.mxu0 0.0
    %904 = vmatpush1.msra.mxu0 0.0
    %905 = vmatprep.subr.mxu0 0.0
    %906 = vmatpush1.msra.mxu0 0.0
    %907 = vmatprep.subr.mxu0 0.0
    %908 = vmatpush1.msra.mxu0 0.0
    %909 = vmatprep.subr.mxu0 0.0
    %910 = vmatpush1.msra.mxu0 0.0
    %911 = vmatprep.subr.mxu0 0.0
    %912 = vmatpush1.msra.mxu0 0.0
    %913 = vmatprep.subr.mxu0 0.0
    %914 = vmatpush1.msra.mxu0 0.0
    %915 = vmatprep.subr.mxu0 0.0
    %916 = vmatpush1.msra.mxu0 0.0
    %917 = vmatprep.subr.mxu0 0.0
    %918 = vmatpush1.msra.mxu0 %v173
    %919 = vmatprep.subr.mxu0 0.0
    %920 = vmatpush1.msra.mxu0 %v172
    %921 = vmatprep.subr.mxu0 0.0
    %922 = vmatpush1.msra.mxu0 %v171
    %923 = vmatprep.subr.mxu0 0.0
    %924 = vmatpush1.msra.mxu0 %v170
    %925 = vmatprep.subr.mxu0 0.0
    %926 = vmatpush2.msra.mxu0 0.0
    %927 = vmatprep.subr.mxu0 0.0
    %928 = vmatpush2.msra.mxu0 0.0
    %929 = vmatprep.subr.mxu0 0.0
    %930 = vmatpush2.msra.mxu0 0.0
    %931 = vmatprep.subr.mxu0 0.0
    %932 = vmatpush2.msra.mxu0 0.0
    %933 = vmatprep.subr.mxu0 0.0
    %934 = vmatpush2.msra.mxu0 0.0
    %935 = vmatprep.subr.mxu0 0.0
    %936 = vmatpush2.msra.mxu0 0.0
    %937 = vmatprep.subr.mxu0 0.0
    %938 = vmatpush2.msra.mxu0 0.0
    %939 = vmatprep.subr.mxu0 0.0
    %940 = vmatpush2.msra.mxu0 0.0
    %941 = vmatprep.subr.mxu0 0.0
    %942 = vmatpush2.msra.mxu0 0.0
    %943 = vmatprep.subr.mxu0 0.0
    %944 = vmatpush2.msra.mxu0 0.0
    %945 = vmatprep.subr.mxu0 0.0
    %946 = vmatpush2.msra.mxu0 0.0
    %947 = vmatprep.subr.mxu0 0.0
    %948 = vmatpush2.msra.mxu0 0.0
    %949 = vmatprep.subr.mxu0 0.0
    %950 = vmatpush2.msra.mxu0 0.0
    %951 = vmatprep.subr.mxu0 0.0
    %952 = vmatpush2.msra.mxu0 0.0
    %953 = vmatprep.subr.mxu0 0.0
    %954 = vmatpush2.msra.mxu0 0.0
    %955 = vmatprep.subr.mxu0 0.0
    %956 = vmatpush2.msra.mxu0 0.0
    %957 = vmatprep.mubr.f32.mxu0 0.0
    %958 = vmatmul.mubr.f32.gmra.mxu0 %v891
    %v959 = vpop.f32.mrf.mxu0
    %v960 = vadd.f32 0.0, %v959
    %v961 = vpop.f32.mrf.mxu0
    %962 = vdwg.mxu0
    %v963 = vadd.f32 %v887, %v960
    %v964 = vxor.u32 %v963, 2147483648
    %v965 = vmul.f32 %v964, 1.442695
    %v966 = vpow.pop %v965
    %v967 = vadd.f32 %v966, 1.0
    %v968 = vrcp.pop %v967
    %v969 = vmul.f32 1.0, %v968
    %v970 = vtanh.pop %v963
    %v971 = vmul.f32 %v969, %v879
    %973 = vrot.lane.b32.xlu0 %v970, 64
    %v974 = vpop.permute.xlu0 %973
    %v976 = vmul.f32 %v969, %v974
    %978 = vrot.lane.b32.xlu0 %v976, 32
    %v979 = vpop.permute.xlu0 %978
    %v981 = vadd.f32 %v971, %v979
    %v982 = vtanh.pop %v981
    %984 = vrot.lane.b32.xlu0 %v982, 64
    %v985 = vpop.permute.xlu0 %984
    %v987 = vmul.f32 %v969, %v985
    %989 = vrot.lane.b32.xlu0 %v987, 32
    %v990 = vpop.permute.xlu0 %989
    %vm992 = vcmask 254976
    %v993 = vsel %vm992, %v990, 0.0
    %994 = vadd.xlane.f32.xlu0 %v993
    %v995 = vpop.xlane.xlu0 %994
    %v996 = vrcp.pop 32.0
    %v997 = vmul.f32 %v995, %v996
    %v998 = vsub.f32 %v987, %v997
    %v999 = vmul.f32 %v998, %v998
    %1001 = vrot.lane.b32.xlu0 %v999, 32
    %v1002 = vpop.permute.xlu0 %1001
    %v1004 = vsel %vm992, %v1002, 0.0
    %1005 = vadd.xlane.f32.xlu0 %v1004
    %v1006 = vpop.xlane.xlu0 %1005
    %v1007 = vmul.f32 %v1006, %v996
    %v1008 = vadd.f32 %v1007, 1e-05
    %v1009 = vrsqrt.pop %v1008
    %v1010 = vmul.f32 %v998, %v1009
    %v1011 = vld [vmem:[%s4] sm:$0x1]
    %v1013 = vlaneseq
    %v1014 = vshrl.u32 %v1013, 7
    %v1015 = vsub.s32 0, %v1014
    %v1016 = vrot.slane %v1011, %v1015
    %1017 = vrot.lane.b32.xlu0 %v1016, 96
    %v1018 = vpop.permute.xlu0 %1017
    %v1020 = vmul.f32 %v1010, %v1018
    %v1021 = vld [vmem:[%s5] sm:$0x1]
    %v1023 = vlaneseq
    %v1024 = vshrl.u32 %v1023, 7
    %v1025 = vsub.s32 0, %v1024
    %v1026 = vrot.slane %v1021, %v1025
    %1027 = vrot.lane.b32.xlu0 %v1026, 96
    %v1028 = vpop.permute.xlu0 %1027
    %v1030 = vadd.f32 %v1020, %v1028
    %1032 = vrot.lane.b32.xlu0 %v1030, 32
    %v1033 = vpop.permute.xlu0 %1032
    %1035 = vst.msk [vmem:[#allocation9] sm:$0x3] %vm992, %v1033
    // Predicated region
    $region38: #{tpu_custom_call.1} parent=1 // pred_check
      _
    $region39: #{tpu_custom_call.1} parent=1 // pred_check_branch
      %1037 = sbr.rel (0) target = $region41
    $region40: #{tpu_custom_call.1} parent=1 // pred_region
      %s1039 = ssub.s32 32, 32
      %1040 = vsyncadd [#allocation5], %s1039
      %s1042 = sshll.u32 [#allocation9], 4
      %s1043 = int_to_ptr.vmem [resolvable:$true] %s1042
      %1045 = dma.vmem_to_hbm [thread:$0]  %s1043, 32, %s6, [#allocation5]
    $region41: #{tpu_custom_call.1} parent=1 // pred_fallthru
      _
    // Predicated region
    $region42: #{tpu_custom_call.1} parent=1 // pred_check
      _
    $region43: #{tpu_custom_call.1} parent=1 // pred_check_branch
      %1047 = sbr.rel (0) target = $region45
    $region44: #{tpu_custom_call.1} parent=1 // pred_region
      %1048 = dma.done [#allocation5], 32
    $region45: #{tpu_custom_call.1} parent=1 // pred_fallthru
      _
    %1049 = vsyncpa [#allocation4], 1
    %1050 = vsyncpa [#allocation7], 1
    %1051 = vsyncpa [#allocation5], 1

</llo_original>
